<compile_context>
chip_gen: v6e
topology: v6e:2x2x1
jax: 0.10.0
libtpu: 0.0.40
codegen_flags: <defaults>
</compile_context>

<pallas_src>
import jax
import jax.numpy as jnp
import numpy as np
from jax import lax
from jax.experimental import pallas as pl
from jax.experimental.pallas import tpu as pltpu


def _round_up(v, m):
    return ((v + m - 1) // m) * m


def _vmem_capacity_bytes():
    try:
        info = pltpu.get_tpu_info()
        cap = getattr(info, "vmem_capacity_bytes", None)
        if cap:
            return int(cap)
    except Exception:
        pass
    return 64 * 1024 * 1024  # conservative (v7x-sized) fallback


def _grouped_moe_kernel(block_expert_ref,  # (num_blocks,) int32 SMEM (prefetch)
                        block_map_ref,     # (num_blocks,) int32 SMEM (prefetch)
                        x_ref,             # (tm, dim)
                        w1_ref,            # (th, dim)  expert tile (leading dim squeezed)
                        w3_ref,            # (th, dim)
                        w2_ref,            # (th, dim)
                        o_ref,             # (tm, dim)
                        acc_ref):          # (tm, dim) f32 VMEM scratch
    i = pl.program_id(0)
    h = pl.program_id(1)
    # Slack (all-padding) blocks have block_map[i] pointing at the last real
    # block, so this test is False there and all compute/stores are skipped.
    is_real = block_map_ref[i] == i

    @pl.when(jnp.logical_and(is_real, h == 0))
    def _():
        acc_ref[...] = jnp.zeros_like(acc_ref)

    @pl.when(is_real)
    def _():
        x = x_ref[...]                                   # (tm, dim)
        # x @ w.T without materializing a transposed weight copy.
        dn = (((1,), (1,)), ((), ()))
        h1 = lax.dot_general(x, w1_ref[...], dn,
                             preferred_element_type=jnp.float32)   # (tm, th)
        h3 = lax.dot_general(x, w3_ref[...], dn,
                             preferred_element_type=jnp.float32)   # (tm, th)
        g = (h1 * jax.nn.sigmoid(h1)) * h3               # silu(h1)*h3, f32
        acc_ref[...] += jnp.dot(g.astype(w2_ref.dtype), w2_ref[...],
                                preferred_element_type=jnp.float32)  # (tm, dim)

    @pl.when(jnp.logical_and(is_real, h == pl.num_programs(1) - 1))
    def _():
        o_ref[...] = acc_ref[...].astype(o_ref.dtype)


def conditional_feed_forward(x, expert_indices, w1, w2, w3, *, tm=None, th=None):
    """Expert-grouped MoE SwiGLU FFN. Returns (T, A, dim), matching the PyTorch module."""
    T, dim = x.shape
    A = expert_indices.shape[1]
    E, hidden, dim_w = w1.shape
    assert dim_w == dim and w2.shape == w1.shape and w3.shape == w1.shape
    N = T * A
    assert N > 0

    x_item = jnp.dtype(x.dtype).itemsize
    w_item = jnp.dtype(w1.dtype).itemsize
    o_item = x_item
    sub_m = 16 if x_item < 4 else 8     # bf16 sublane packing is (16, 128)
    sub_h = 16 if w_item < 4 else 8

    vmem_cap = _vmem_capacity_bytes()
    budget = int(vmem_cap * 0.85)

    # ---------------- tile selection (generation-aware) ----------------
    user_tm = tm is not None
    if tm is None:
        # >=96 MiB VMEM (v5e/v6e) -> tm=512; 64 MiB (v7x) -> tm=256.
        tm = 512 if vmem_cap >= 96 * 1024 * 1024 else 256
        # Bound by expected tokens-per-expert so per-group padding can't dominate.
        avg_rows = max(1, N // max(E, 1))
        tm = min(tm, _round_up(4 * avg_rows, sub_m))
    tm = _round_up(max(int(tm), sub_m), sub_m)
    tm = max(sub_m, min(tm, _round_up(N, sub_m)))

    if th is None:
        th = hidden
        for cand in range(min(512, hidden), 0, -1):
            if hidden % cand == 0 and (cand % sub_h == 0 or cand == hidden):
                th = cand
                break
    assert hidden % th == 0, "th must divide hidden"
    assert th % sub_h == 0 or th == hidden

    def _tile_bytes(tm_, th_):
        return (2 * 3 * th_ * dim * w_item     # w1/w3/w2 tiles, double-buffered
                + 2 * tm_ * dim * x_item       # x tile, double-buffered
                + 2 * tm_ * dim * o_item       # out tile, double-buffered
                + tm_ * dim * 4)               # f32 accumulator scratch

    # Auto-shrink (only relevant when auto-picked tiles would blow VMEM).
    while _tile_bytes(tm, th) > budget and tm > sub_m and not user_tm:
        tm = max(sub_m, (tm // 2 // sub_m) * sub_m)
    while _tile_bytes(tm, th) > budget and th > sub_h:
        smaller = [c for c in range(th - sub_h, sub_h - 1, -sub_h) if hidden % c == 0]
        if not smaller:
            break
        th = smaller[0]

    num_h = hidden // th
    tile_bytes = _tile_bytes(tm, th)
    vmem_limit = int(tile_bytes * 1.25) + (4 << 20)
    vmem_limit = max(vmem_limit, 16 << 20)
    vmem_limit = min(vmem_limit, int(vmem_cap * 0.9))

    # ---------------- grouping metadata (static shapes, jit-compatible) ----------------
    flat_e = expert_indices.reshape(-1).astype(jnp.int32)            # (N,)
    order = jnp.argsort(flat_e, stable=True).astype(jnp.int32)       # sorted pos -> flat row
    sorted_e = flat_e[order]                                         # (N,)

    group_sizes = jnp.bincount(flat_e, length=E).astype(jnp.int32)               # (E,)
    padded_sizes = ((group_sizes + tm - 1) // tm) * tm                           # (E,)
    cum_padded = jnp.cumsum(padded_sizes).astype(jnp.int32)                      # (E,)
    padded_starts = cum_padded - padded_sizes                                    # (E,)
    unpadded_starts = (jnp.cumsum(group_sizes) - group_sizes).astype(jnp.int32)  # (E,)

    # Destination row in the expert-grouped, per-group-padded buffer per sorted row.
    pos_in_group = jnp.arange(N, dtype=jnp.int32) - unpadded_starts[sorted_e]
    dest = (padded_starts[sorted_e] + pos_in_group).astype(jnp.int32)            # (N,)

    # Static upper bound on padded rows (each non-empty group pads < tm rows).
    M_pad = _round_up(N + E * (tm - 1), tm)
    num_blocks = M_pad // tm

    total_rows = cum_padded[E - 1]                                    # dynamic real rows
    block_row = jnp.arange(num_blocks, dtype=jnp.int32) * tm
    block_is_real = block_row < total_rows
    block_expert_raw = jnp.searchsorted(cum_padded, block_row, side="right").astype(jnp.int32)
    last_real_block = jnp.maximum(total_rows // tm - 1, 0).astype(jnp.int32)
    last_expert = jnp.minimum(block_expert_raw[last_real_block], E - 1)
    # Slack blocks reuse the last real block's expert id (and, via block_map,
    # its block index) so their input DMAs are elided by the pipeliner.
    block_expert = jnp.where(block_is_real,
                             jnp.minimum(block_expert_raw, E - 1),
                             last_expert).astype(jnp.int32)
    block_map = jnp.where(block_is_real,
                          jnp.arange(num_blocks, dtype=jnp.int32),
                          last_real_block).astype(jnp.int32)

    # Gather activations directly into expert-grouped order (no (M_pad, dim)
    # zero-init + scatter).  Padding/slack rows read token 0; their outputs are
    # computed-but-never-read (padding) or skipped entirely (slack).
    src_token = (order // A).astype(jnp.int32)                        # (N,)
    row_src = jnp.zeros((M_pad,), jnp.int32).at[dest].set(src_token)  # (M_pad,)
    x_pad = jnp.take(x, row_src, axis=0)                              # (M_pad, dim)
    # TODO(synk): fold this gather and the final un-permute into the kernel via
    # scalar-prefetched row indices (pl.Element row gather) to drop ~2 passes of
    # HBM traffic outside the kernel.

    # ---------------- cost estimate (weights counted per real m-block & h-tile) ------
    blocks_est = min(num_blocks, -(-N // tm) + E)       # static over-estimate of real blocks
    m_rows_est = blocks_est * tm
    cost = pl.CostEstimate(
        flops=3 * 2 * m_rows_est * hidden * dim,
        transcendentals=m_rows_est * hidden,
        bytes_accessed=(3 * blocks_est * hidden * dim * w_item
                        + 2 * m_rows_est * dim * x_item),
    )

    num_h_last = num_h - 1

    def w_index_map(i, h, be, bm):
        # Slack blocks repeat the last real block's (expert, last-h) tile -> DMA elided.
        h_idx = jnp.where(bm[i] == i, h, num_h_last)
        return (be[i], h_idx, 0)

    def x_index_map(i, h, be, bm):
        return (bm[i], 0)

    def out_index_map(i, h, be, bm):
        # Slack blocks write their own never-read rows.  Do NOT alias them onto a
        # real block: under a megacore split a core holding only slack blocks would
        # write garbage over real output.
        return (i, 0)

    out_pad = pl.pallas_call(
        _grouped_moe_kernel,
        out_shape=jax.ShapeDtypeStruct((M_pad, dim), x.dtype),
        grid_spec=pltpu.PrefetchScalarGridSpec(
            num_scalar_prefetch=2,
            grid=(num_blocks, num_h),
            in_specs=[
                # x tile stays resident across the whole hidden reduction.
                pl.BlockSpec((tm, dim), x_index_map),
                # Expert-gathered weight tiles (leading expert dim squeezed).
                pl.BlockSpec((pl.Squeezed(), th, dim), w_index_map),   # w1
                pl.BlockSpec((pl.Squeezed(), th, dim), w_index_map),   # w3
                pl.BlockSpec((pl.Squeezed(), th, dim), w_index_map),   # w2
            ],
            # Dense (tm, dim) lane-aligned output tile, written once per m-block.
            out_specs=pl.BlockSpec((tm, dim), out_index_map),
            scratch_shapes=[pltpu.VMEM((tm, dim), jnp.float32)],
        ),
        compiler_params=pltpu.CompilerParams(
            dimension_semantics=("parallel", "arbitrary"),
            vmem_limit_bytes=vmem_limit,
        ),
        cost_estimate=cost,
    )(block_expert, block_map, x_pad, w1, w3, w2)

    # Un-permute back to the original (token, slot) order.
    dest_by_orig = jnp.zeros((N,), jnp.int32).at[order].set(dest)
    return out_pad[dest_by_orig].reshape(T, A, dim)


def ref_conditional_feed_forward(x, expert_indices, w1, w2, w3):
    # Pure-JAX reference mirroring the PyTorch forward exactly.
    w1g = w1[expert_indices]                                  # (T, A, hidden, dim)
    w3g = w3[expert_indices]
    w2g = w2[expert_indices]
    x1 = jax.nn.silu(jnp.einsum('td,tahd->tah', x, w1g))
    x3 = jnp.einsum('td,tahd->tah', x, w3g)
    return jnp.einsum('tah,tahd->tad', x1 * x3, w2g)


def ref_conditional_feed_forward_bf16(x, expert_indices, w1, w2, w3):
    # Mirrors the kernel's bf16 numerics: bf16 operands, f32 MXU accumulation,
    # SwiGLU product cast to bf16 before the down-projection, bf16 output.
    xf = x.astype(jnp.float32)
    w1g = w1[expert_indices].astype(jnp.float32)
    w3g = w3[expert_indices].astype(jnp.float32)
    w2g = w2[expert_indices].astype(jnp.float32)
    h1 = jnp.einsum('td,tahd->tah', xf, w1g)
    h3 = jnp.einsum('td,tahd->tah', xf, w3g)
    g = (jax.nn.silu(h1) * h3).astype(jnp.bfloat16).astype(jnp.float32)
    out = jnp.einsum('tah,tahd->tad', g, w2g)
    return out.astype(x.dtype)


if __name__ == "__main__":
    # Small synthetic config: dim=32, hidden_dim=64, num_experts=4; T=8 tokens,
    # A=2 experts routed per token.
    dim, hidden_dim, num_experts = 32, 64, 4
    T, A = 8, 2

    key = jax.random.PRNGKey(0)
    k_w1, k_w2, k_w3, k_x, k_idx = jax.random.split(key, 5)

    w1 = jax.random.normal(k_w1, (num_experts, hidden_dim, dim), dtype=jnp.float32)
    w2 = jax.random.normal(k_w2, (num_experts, hidden_dim, dim), dtype=jnp.float32)
    w3 = jax.random.normal(k_w3, (num_experts, hidden_dim, dim), dtype=jnp.float32)
    x = jax.random.normal(k_x, (T, dim), dtype=jnp.float32)
    expert_indices = jax.random.randint(k_idx, (T, A), 0, num_experts, dtype=jnp.int32)

    ref = ref_conditional_feed_forward(x, expert_indices, w1, w2, w3)

    # f32, explicit small tiles: exercises multi-block grouping, the hidden
    # reduction (th=32 -> 2 h-tiles), and slack-block skipping.
    out = conditional_feed_forward(x, expert_indices, w1, w2, w3, tm=8, th=32)
    out = jax.block_until_ready(out)
    np.testing.assert_allclose(np.asarray(out), np.asarray(ref), rtol=1e-4, atol=1e-3)

    # f32, auto tile selection (generation-aware defaults collapse to one h-tile here).
    out_auto = jax.block_until_ready(
        conditional_feed_forward(x, expert_indices, w1, w2, w3))
    np.testing.assert_allclose(np.asarray(out_auto), np.asarray(ref), rtol=1e-4, atol=1e-3)

    # bf16 weights/activations (halved weight DMA, native MXU bf16 path); blocks
    # use 16-row sublane multiples; accumulation stays f32 inside the kernel.
    xb, w1b, w2b, w3b = (a.astype(jnp.bfloat16) for a in (x, w1, w2, w3))
    out_b = conditional_feed_forward(xb, expert_indices, w1b, w2b, w3b, tm=16, th=32)
    out_b = jax.block_until_ready(out_b)
    ref_b = ref_conditional_feed_forward_bf16(xb, expert_indices, w1b, w2b, w3b)
    np.testing.assert_allclose(np.asarray(out_b, dtype=np.float32),
                               np.asarray(ref_b, dtype=np.float32),
                               rtol=5e-2, atol=0.5)

    print("KERNEL_OK")
</pallas_src>

<mosaic_0001>
module attributes {stable_mosaic.version = 11 : i64} {
  func.func @_grouped_moe_kernel(%arg0: i32, %arg1: i32, %arg2: memref<6xi32, #tpu.memory_space<smem>>, %arg3: memref<6xi32, #tpu.memory_space<smem>>, %arg4: memref<8x32xf32, #tpu.memory_space<vmem>>, %arg5: memref<1x32x32xf32, #tpu.memory_space<vmem>>, %arg6: memref<1x32x32xf32, #tpu.memory_space<vmem>>, %arg7: memref<1x32x32xf32, #tpu.memory_space<vmem>>, %arg8: memref<8x32xf32, #tpu.memory_space<vmem>>, %arg9: memref<8x32xf32, #tpu.memory_space<vmem>>) attributes {dimension_semantics = [#tpu.dimension_semantics<parallel>, #tpu.dimension_semantics<arbitrary>], iteration_bounds = array<i64: 6, 2>, scalar_prefetch = 2 : i64, scratch_operands = 1 : i64, tpu.core_type = #tpu.core_type<tc>, window_params = [{transform_indices = @transform_0, window_bounds = array<i64: 8, 32>}, {transform_indices = @transform_1, window_bounds = array<i64: 1, 32, 32>}, {transform_indices = @transform_2, window_bounds = array<i64: 1, 32, 32>}, {transform_indices = @transform_3, window_bounds = array<i64: 1, 32, 32>}, {transform_indices = @transform_4, window_bounds = array<i64: 8, 32>}]} {
    %0 = arith.index_cast %arg0 : i32 to index
    %1 = memref.load %arg3[%0] : memref<6xi32, #tpu.memory_space<smem>>
    %2 = arith.cmpi eq, %1, %arg0 : i32
    %c0_i32 = arith.constant 0 : i32
    %3 = arith.cmpi eq, %arg1, %c0_i32 : i32
    %4 = arith.andi %2, %3 : i1
    %5 = arith.extui %4 : i1 to i32
    %c0_i32_0 = arith.constant 0 : i32
    %6 = arith.cmpi ne, %5, %c0_i32_0 : i32
    scf.if %6 {
      %cst = arith.constant 0.000000e+00 : f32
      %13 = vector.broadcast %cst : f32 to vector<8x32xf32>
      %c0 = arith.constant 0 : index
      %c0_3 = arith.constant 0 : index
      %14 = vector.load %arg9[%c0, %c0_3] : memref<8x32xf32, #tpu.memory_space<vmem>>, vector<8x32xf32>
      tpu.vector_store %arg9[%c0, %c0_3], %13 {strides = array<i32>} : memref<8x32xf32, #tpu.memory_space<vmem>>, vector<8x32xf32>,
    } else {
    }
    %7 = arith.extui %2 : i1 to i32
    %c0_i32_1 = arith.constant 0 : i32
    %8 = arith.cmpi ne, %7, %c0_i32_1 : i32
    scf.if %8 {
      %c0 = arith.constant 0 : index
      %c0_3 = arith.constant 0 : index
      %13 = vector.load %arg4[%c0, %c0_3] : memref<8x32xf32, #tpu.memory_space<vmem>>, vector<8x32xf32>
      %c0_4 = arith.constant 0 : index
      %c0_5 = arith.constant 0 : index
      %c0_6 = arith.constant 0 : index
      %14 = vector.load %arg5[%c0_4, %c0_5, %c0_6] : memref<1x32x32xf32, #tpu.memory_space<vmem>>, vector<1x32x32xf32>
      %15 = vector.shape_cast %14 : vector<1x32x32xf32> to vector<32x32xf32>
      %cst = arith.constant dense<0.000000e+00> : vector<8x32xf32>
      %16 = tpu.matmul %13, %15, %cst {dimension_numbers = #tpu.dot_dimension_numbers<[1], [1], [0], [0], [0, 0, 1, 0], [], []>} : vector<8x32xf32>, vector<32x32xf32>, vector<8x32xf32> -> vector<8x32xf32>
      %c0_7 = arith.constant 0 : index
      %c0_8 = arith.constant 0 : index
      %c0_9 = arith.constant 0 : index
      %17 = vector.load %arg6[%c0_7, %c0_8, %c0_9] : memref<1x32x32xf32, #tpu.memory_space<vmem>>, vector<1x32x32xf32>
      %18 = vector.shape_cast %17 : vector<1x32x32xf32> to vector<32x32xf32>
      %cst_10 = arith.constant dense<0.000000e+00> : vector<8x32xf32>
      %19 = tpu.matmul %13, %18, %cst_10 {dimension_numbers = #tpu.dot_dimension_numbers<[1], [1], [0], [0], [0, 0, 1, 0], [], []>} : vector<8x32xf32>, vector<32x32xf32>, vector<8x32xf32> -> vector<8x32xf32>
      %20 = arith.negf %16 : vector<8x32xf32>
      %21 = math.exp %20 : vector<8x32xf32>
      %cst_11 = arith.constant 1.000000e+00 : f32
      %22 = vector.broadcast %cst_11 : f32 to vector<8x32xf32>
      %23 = arith.addf %22, %21 : vector<8x32xf32>
      %24 = arith.divf %22, %23 : vector<8x32xf32>
      %25 = arith.mulf %16, %24 : vector<8x32xf32>
      %26 = arith.mulf %25, %19 : vector<8x32xf32>
      %c0_12 = arith.constant 0 : index
      %c0_13 = arith.constant 0 : index
      %27 = vector.load %arg9[%c0_12, %c0_13] : memref<8x32xf32, #tpu.memory_space<vmem>>, vector<8x32xf32>
      %c0_14 = arith.constant 0 : index
      %c0_15 = arith.constant 0 : index
      %c0_16 = arith.constant 0 : index
      %28 = vector.load %arg7[%c0_14, %c0_15, %c0_16] : memref<1x32x32xf32, #tpu.memory_space<vmem>>, vector<1x32x32xf32>
      %29 = vector.shape_cast %28 : vector<1x32x32xf32> to vector<32x32xf32>
      %cst_17 = arith.constant dense<0.000000e+00> : vector<8x32xf32>
      %30 = tpu.matmul %26, %29, %cst_17 {dimension_numbers = #tpu.dot_dimension_numbers<[1], [0], [0], [1], [0, 0, 1, 1], [], []>} : vector<8x32xf32>, vector<32x32xf32>, vector<8x32xf32> -> vector<8x32xf32>
      %31 = arith.addf %27, %30 : vector<8x32xf32>
      %c0_18 = arith.constant 0 : index
      %c0_19 = arith.constant 0 : index
      %32 = vector.load %arg9[%c0_18, %c0_19] : memref<8x32xf32, #tpu.memory_space<vmem>>, vector<8x32xf32>
      tpu.vector_store %arg9[%c0_18, %c0_19], %31 {strides = array<i32>} : memref<8x32xf32, #tpu.memory_space<vmem>>, vector<8x32xf32>,
    } else {
    }
    %c1_i32 = arith.constant 1 : i32
    %9 = arith.cmpi eq, %arg1, %c1_i32 : i32
    %10 = arith.andi %2, %9 : i1
    %11 = arith.extui %10 : i1 to i32
    %c0_i32_2 = arith.constant 0 : i32
    %12 = arith.cmpi ne, %11, %c0_i32_2 : i32
    scf.if %12 {
      %c0 = arith.constant 0 : index
      %c0_3 = arith.constant 0 : index
      %13 = vector.load %arg9[%c0, %c0_3] : memref<8x32xf32, #tpu.memory_space<vmem>>, vector<8x32xf32>
      %c0_4 = arith.constant 0 : index
      %c0_5 = arith.constant 0 : index
      %14 = vector.load %arg8[%c0_4, %c0_5] : memref<8x32xf32, #tpu.memory_space<vmem>>, vector<8x32xf32>
      tpu.vector_store %arg8[%c0_4, %c0_5], %13 {strides = array<i32>} : memref<8x32xf32, #tpu.memory_space<vmem>>, vector<8x32xf32>,
    } else {
    }
    return
  }
  func.func @transform_0(%arg0: i32, %arg1: i32, %arg2: memref<6xi32, #tpu.memory_space<smem>>, %arg3: memref<6xi32, #tpu.memory_space<smem>>) -> (i32, i32) {
    %0 = arith.index_cast %arg0 : i32 to index
    %1 = memref.load %arg3[%0] : memref<6xi32, #tpu.memory_space<smem>>
    %c0_i32 = arith.constant 0 : i32
    %c0_i32_0 = arith.constant 0 : i32
    return %1, %c0_i32 : i32, i32
  }
  func.func @transform_1(%arg0: i32, %arg1: i32, %arg2: memref<6xi32, #tpu.memory_space<smem>>, %arg3: memref<6xi32, #tpu.memory_space<smem>>) -> (i32, i32, i32) {
    %0 = arith.index_cast %arg0 : i32 to index
    %1 = memref.load %arg3[%0] : memref<6xi32, #tpu.memory_space<smem>>
    %2 = arith.cmpi eq, %1, %arg0 : i32
    %c1_i32 = arith.constant 1 : i32
    %3 = arith.select %2, %arg1, %c1_i32 : i32
    %4 = arith.index_cast %arg0 : i32 to index
    %5 = memref.load %arg2[%4] : memref<6xi32, #tpu.memory_space<smem>>
    %c0_i32 = arith.constant 0 : i32
    %c0_i32_0 = arith.constant 0 : i32
    return %5, %3, %c0_i32 : i32, i32, i32
  }
  func.func @transform_2(%arg0: i32, %arg1: i32, %arg2: memref<6xi32, #tpu.memory_space<smem>>, %arg3: memref<6xi32, #tpu.memory_space<smem>>) -> (i32, i32, i32) {
    %0 = arith.index_cast %arg0 : i32 to index
    %1 = memref.load %arg3[%0] : memref<6xi32, #tpu.memory_space<smem>>
    %2 = arith.cmpi eq, %1, %arg0 : i32
    %c1_i32 = arith.constant 1 : i32
    %3 = arith.select %2, %arg1, %c1_i32 : i32
    %4 = arith.index_cast %arg0 : i32 to index
    %5 = memref.load %arg2[%4] : memref<6xi32, #tpu.memory_space<smem>>
    %c0_i32 = arith.constant 0 : i32
    %c0_i32_0 = arith.constant 0 : i32
    return %5, %3, %c0_i32 : i32, i32, i32
  }
  func.func @transform_3(%arg0: i32, %arg1: i32, %arg2: memref<6xi32, #tpu.memory_space<smem>>, %arg3: memref<6xi32, #tpu.memory_space<smem>>) -> (i32, i32, i32) {
    %0 = arith.index_cast %arg0 : i32 to index
    %1 = memref.load %arg3[%0] : memref<6xi32, #tpu.memory_space<smem>>
    %2 = arith.cmpi eq, %1, %arg0 : i32
    %c1_i32 = arith.constant 1 : i32
    %3 = arith.select %2, %arg1, %c1_i32 : i32
    %4 = arith.index_cast %arg0 : i32 to index
    %5 = memref.load %arg2[%4] : memref<6xi32, #tpu.memory_space<smem>>
    %c0_i32 = arith.constant 0 : i32
    %c0_i32_0 = arith.constant 0 : i32
    return %5, %3, %c0_i32 : i32, i32, i32
  }
  func.func @transform_4(%arg0: i32, %arg1: i32, %arg2: memref<6xi32, #tpu.memory_space<smem>>, %arg3: memref<6xi32, #tpu.memory_space<smem>>) -> (i32, i32) {
    %c0_i32 = arith.constant 0 : i32
    %c0_i32_0 = arith.constant 0 : i32
    return %arg0, %c0_i32 : i32, i32
  }
}

</mosaic_0001>

<llo_original>
// kernel: tpu_custom_call.1
$region0: #{tpu_custom_call.1}
  #allocation0 [shape = 'u32[]', space=smem, size = 0x4, offset = 0x4, fixed_abs, tag = 'smem constant byte address 0x4 - core index']
  #allocation1 [shape = 'u32[144,128]{1,0:T(1,128)}', space=vmem, size = 0x12000, scoped, tag = 'internal scratch']
  #allocation2 [shape = 'f32[8,32]{1,0:T(8,128)}', space=vmem, size = 0x1000, scoped, tag = 'scratch operand']
  #allocation3 [shape = 's32[1]{0}', space=sflag, size = 0x4, scoped, tag = 'scoped memory for tpu_custom_call.1']
  #allocation4 [shape = 'u8[512]{0}', space=smem, size = 0x200, scoped, tag = 'prefetched SMEM operand 0']
  #allocation5 [shape = 'u8[512]{0}', space=smem, size = 0x200, scoped, tag = 'prefetched SMEM operand 1']
  %s0 = inlined_call_operand.vmem [shape: s32[6], index: 0, kind: input, shape index: {}]
  %s1 = inlined_call_operand.vmem [shape: s32[6], index: 1, kind: input, shape index: {}]
  %s2 = inlined_call_operand.vmem [shape: f32[48,32], index: 2, kind: input, shape index: {}]
  %s3 = inlined_call_operand.vmem [shape: f32[4,64,32], index: 3, kind: input, shape index: {}]
  %s4 = inlined_call_operand.vmem [shape: f32[4,64,32], index: 4, kind: input, shape index: {}]
  %s5 = inlined_call_operand.vmem [shape: f32[4,64,32], index: 5, kind: input, shape index: {}]
  %s6 = inlined_call_operand.vmem [shape: f32[48,32], index: 6, kind: output, shape index: {}]
  %s7 = sld [smem:[#allocation0]]
  $region61: #{tpu_custom_call.1} parent=0
    _
  %s9 = ssub.s32 1, %s7
  %s10 = scalar_select 0, %s9, %s7
  %s11 = sshll.u32 %s0, 4
  %s12 = int_to_ptr.vmem [resolvable:$true] %s11
  %14 = dma.vmem_to_smem %s12, 16, [#allocation4], [#allocation3]
  %s15 = sshll.u32 %s1, 4
  %s16 = int_to_ptr.vmem [resolvable:$true] %s15
  %18 = dma.vmem_to_smem %s16, 16, [#allocation5], [#allocation3]
  %19 = dma.done [#allocation3], 32
  %20 = sfence
  loop: start=0, step=1, limit=14
  $region2: #{tpu_custom_call.1} parent=0 // loop_pre_header
    _
  $region3: #{tpu_custom_call.1} parent=0 // loop_header
    %s22 = sphi 0, %s26
    %p23 = scmp.ge.s32.totalorder %s22, 14
    %s29 = sphi 0, %s41
    %s30 = sphi 0, %s37
    %s31 = sphi 0, %s29
    %s32 = sphi 0, %s30
    %s33 = sphi 0, %s31
    %s34 = sphi 0, %s32
    %s46 = sphi 0, %s48
    %s49 = sphi 0, %s46
    %s50 = sphi 0, %s49
    %s66 = sphi 0, %s50
    %s82 = sphi 0, %s84
    %s85 = sphi 0, %s82
    %s86 = sphi 0, %s85
    %s102 = sphi 0, %s86
    %s118 = sphi 0, %s120
    %s121 = sphi 0, %s118
    %s122 = sphi 0, %s121
    %s138 = sphi 0, %s122
    %s154 = sphi 0, %s156
    %s157 = sphi 0, %s154
    %s158 = sphi 0, %s157
    %s174 = sphi 0, %s158
    %s180 = sphi 0, %s182
    %s183 = sphi 0, %s180
    %s184 = sphi 0, %s183
    %s200 = sphi 0, %s184
  $region4: #{tpu_custom_call.1} parent=0 // loop_header_branch
    %25 = sbr.rel (%p23) target = $region8
  $region5: #{tpu_custom_call.1} parent=0 // loop_body
    %s27 = ssub.s32 %s22, 1
    %s28 = ssub.s32 %s22, 2
    %s35 = sadd.s32 1, %s30
    %p36 = scmp.ge.s32.totalorder %s35, 2
    %s37 = scalar_select %p36, 0, %s35
    %s38 = sadd.s32 1, %s29
    %s39 = scalar_select %p36, %s38, %s29
    %p40 = scmp.ge.s32.totalorder %s39, 6
    %s41 = scalar_select %p40, 0, %s39
    %s42 = sld [smem:[#allocation5 + %s29]]
    %s43 = sld [smem:[#allocation5 + %s41]]
    %s44 = ssub.s32 %s42, %s43
    %p45 = scmp.eq.s32.totalorder %s44, 0
    %s47 = sadd.s32 %s46, 1
    %s48 = scalar_select %p45, %s46, %s47
    %p51 = pneg %p45
    %p52 = scmp.eq.s32.totalorder %s22, 11
    %p53 = por %p51, %p52
    %p54 = scmp.ne.s32.totalorder %s46, %s49
    %p55 = scmp.eq.s32.totalorder %s22, 0
    %p56 = por %p54, %p55
    %p57 = scmp.ne.s32.totalorder %s46, %s49
    %p58 = scmp.eq.s32.totalorder %s27, 11
    %p59 = por %p57, %p58
    %p60 = scmp.ne.s32.totalorder %s49, %s50
    %p61 = scmp.eq.s32.totalorder %s27, 0
    %p62 = por %p60, %p61
    %p63 = scmp.ne.s32.totalorder %s49, %s50
    %p64 = scmp.eq.s32.totalorder %s28, 11
    %p65 = por %p63, %p64
    %p67 = scmp.ne.s32.totalorder %s50, %s66
    %p68 = scmp.eq.s32.totalorder %s28, 0
    %p69 = por %p67, %p68
    %s70 = sld [smem:[#allocation5 + %s29]]
    %p71 = scmp.eq.s32.totalorder %s70, %s29
    %s72 = scalar_select %p71, %s30, 1
    %s73 = sld [smem:[#allocation4 + %s29]]
    %s74 = sld [smem:[#allocation5 + %s41]]
    %p75 = scmp.eq.s32.totalorder %s74, %s41
    %s76 = scalar_select %p75, %s37, 1
    %s77 = sld [smem:[#allocation4 + %s41]]
    %s78 = ssub.s32 %s73, %s77
    %s79 = ssub.s32 %s72, %s76
    %s80 = sor.u32 %s78, %s79
    %p81 = scmp.eq.s32.totalorder %s80, 0
    %s83 = sadd.s32 %s82, 1
    %s84 = scalar_select %p81, %s82, %s83
    %p87 = pneg %p81
    %p88 = scmp.eq.s32.totalorder %s22, 11
    %p89 = por %p87, %p88
    %p90 = scmp.ne.s32.totalorder %s82, %s85
    %p91 = scmp.eq.s32.totalorder %s22, 0
    %p92 = por %p90, %p91
    %p93 = scmp.ne.s32.totalorder %s82, %s85
    %p94 = scmp.eq.s32.totalorder %s27, 11
    %p95 = por %p93, %p94
    %p96 = scmp.ne.s32.totalorder %s85, %s86
    %p97 = scmp.eq.s32.totalorder %s27, 0
    %p98 = por %p96, %p97
    %p99 = scmp.ne.s32.totalorder %s85, %s86
    %p100 = scmp.eq.s32.totalorder %s28, 11
    %p101 = por %p99, %p100
    %p103 = scmp.ne.s32.totalorder %s86, %s102
    %p104 = scmp.eq.s32.totalorder %s28, 0
    %p105 = por %p103, %p104
    %s106 = sld [smem:[#allocation5 + %s29]]
    %p107 = scmp.eq.s32.totalorder %s106, %s29
    %s108 = scalar_select %p107, %s30, 1
    %s109 = sld [smem:[#allocation4 + %s29]]
    %s110 = sld [smem:[#allocation5 + %s41]]
    %p111 = scmp.eq.s32.totalorder %s110, %s41
    %s112 = scalar_select %p111, %s37, 1
    %s113 = sld [smem:[#allocation4 + %s41]]
    %s114 = ssub.s32 %s109, %s113
    %s115 = ssub.s32 %s108, %s112
    %s116 = sor.u32 %s114, %s115
    %p117 = scmp.eq.s32.totalorder %s116, 0
    %s119 = sadd.s32 %s118, 1
    %s120 = scalar_select %p117, %s118, %s119
    %p123 = pneg %p117
    %p124 = scmp.eq.s32.totalorder %s22, 11
    %p125 = por %p123, %p124
    %p126 = scmp.ne.s32.totalorder %s118, %s121
    %p127 = scmp.eq.s32.totalorder %s22, 0
    %p128 = por %p126, %p127
    %p129 = scmp.ne.s32.totalorder %s118, %s121
    %p130 = scmp.eq.s32.totalorder %s27, 11
    %p131 = por %p129, %p130
    %p132 = scmp.ne.s32.totalorder %s121, %s122
    %p133 = scmp.eq.s32.totalorder %s27, 0
    %p134 = por %p132, %p133
    %p135 = scmp.ne.s32.totalorder %s121, %s122
    %p136 = scmp.eq.s32.totalorder %s28, 11
    %p137 = por %p135, %p136
    %p139 = scmp.ne.s32.totalorder %s122, %s138
    %p140 = scmp.eq.s32.totalorder %s28, 0
    %p141 = por %p139, %p140
    %s142 = sld [smem:[#allocation5 + %s29]]
    %p143 = scmp.eq.s32.totalorder %s142, %s29
    %s144 = scalar_select %p143, %s30, 1
    %s145 = sld [smem:[#allocation4 + %s29]]
    %s146 = sld [smem:[#allocation5 + %s41]]
    %p147 = scmp.eq.s32.totalorder %s146, %s41
    %s148 = scalar_select %p147, %s37, 1
    %s149 = sld [smem:[#allocation4 + %s41]]
    %s150 = ssub.s32 %s145, %s149
    %s151 = ssub.s32 %s144, %s148
    %s152 = sor.u32 %s150, %s151
    %p153 = scmp.eq.s32.totalorder %s152, 0
    %s155 = sadd.s32 %s154, 1
    %s156 = scalar_select %p153, %s154, %s155
    %p159 = pneg %p153
    %p160 = scmp.eq.s32.totalorder %s22, 11
    %p161 = por %p159, %p160
    %p162 = scmp.ne.s32.totalorder %s154, %s157
    %p163 = scmp.eq.s32.totalorder %s22, 0
    %p164 = por %p162, %p163
    %p165 = scmp.ne.s32.totalorder %s154, %s157
    %p166 = scmp.eq.s32.totalorder %s27, 11
    %p167 = por %p165, %p166
    %p168 = scmp.ne.s32.totalorder %s157, %s158
    %p169 = scmp.eq.s32.totalorder %s27, 0
    %p170 = por %p168, %p169
    %p171 = scmp.ne.s32.totalorder %s157, %s158
    %p172 = scmp.eq.s32.totalorder %s28, 11
    %p173 = por %p171, %p172
    %p175 = scmp.ne.s32.totalorder %s158, %s174
    %p176 = scmp.eq.s32.totalorder %s28, 0
    %p177 = por %p175, %p176
    %s178 = ssub.s32 %s29, %s41
    %p179 = scmp.eq.s32.totalorder %s178, 0
    %s181 = sadd.s32 %s180, 1
    %s182 = scalar_select %p179, %s180, %s181
    %p185 = pneg %p179
    %p186 = scmp.eq.s32.totalorder %s22, 11
    %p187 = por %p185, %p186
    %p188 = scmp.ne.s32.totalorder %s180, %s183
    %p189 = scmp.eq.s32.totalorder %s22, 0
    %p190 = por %p188, %p189
    %p191 = scmp.ne.s32.totalorder %s180, %s183
    %p192 = scmp.eq.s32.totalorder %s27, 11
    %p193 = por %p191, %p192
    %p194 = scmp.ne.s32.totalorder %s183, %s184
    %p195 = scmp.eq.s32.totalorder %s27, 0
    %p196 = por %p194, %p195
    %p197 = scmp.ne.s32.totalorder %s183, %s184
    %p198 = scmp.eq.s32.totalorder %s28, 11
    %p199 = por %p197, %p198
    %p201 = scmp.ne.s32.totalorder %s184, %s200
    %p202 = scmp.eq.s32.totalorder %s28, 0
    %p203 = por %p201, %p202
    %p204 = scmp.le.s32.totalorder 1, %s22
    %p205 = scmp.lt.s32.totalorder %s22, 13
    %p206 = pnand %p204, %p205
    %p207 = pneg %p206
    // Predicated region
    $region9: #{tpu_custom_call.1} parent=5 // pred_check
      _
    $region10: #{tpu_custom_call.1} parent=5 // pred_check_branch
      %209 = sbr.rel (%p206) target = $region12
    $region11: #{tpu_custom_call.1} parent=5 // pred_region
      %s210 = ssub.s32 %s22, 1
    $region12: #{tpu_custom_call.1} parent=5 // pred_fallthru
      _
    %p211 = scmp.lt.s32.totalorder %s22, 12
    // Predicated region
    $region13: #{tpu_custom_call.1} parent=5 // pred_check
      %p212 = pneg %p211
    $region14: #{tpu_custom_call.1} parent=5 // pred_check_branch
      %214 = sbr.rel (%p212) target = $region16
    $region15: #{tpu_custom_call.1} parent=5 // pred_region
      // Predicated region
      $region17: #{tpu_custom_call.1} parent=15 // pred_check
        %p215 = pneg %p56
      $region18: #{tpu_custom_call.1} parent=15 // pred_check_branch
        %217 = sbr.rel (%p215) target = $region20
      $region19: #{tpu_custom_call.1} parent=15 // pred_region
        %s218 = sld [smem:[#allocation5 + %s29]]
        %p219 = scmp.lt.s32.totalorder %s218, 5
        %s220 = scalar_select %p219, %s218, 5
        %s221 = smul.addr %s220, 8
        %s222 = scalar_lea.vmem %s2, %s221
        %s223 = sld [smem:[#allocation5 + %s29]]
      $region20: #{tpu_custom_call.1} parent=15 // pred_fallthru
        _
      // Predicated region
      $region21: #{tpu_custom_call.1} parent=15 // pred_check
        %p224 = pneg %p92
      $region22: #{tpu_custom_call.1} parent=15 // pred_check_branch
        %226 = sbr.rel (%p224) target = $region24
      $region23: #{tpu_custom_call.1} parent=15 // pred_region
        %s227 = sld [smem:[#allocation5 + %s29]]
        %p228 = scmp.eq.s32.totalorder %s227, %s29
        %s229 = scalar_select %p228, %s30, 1
        %s230 = sld [smem:[#allocation4 + %s29]]
        %s231 = smul.u32 4, %s229
        %p232 = scmp.lt.s32.totalorder %s230, 3
        %s233 = scalar_select %p232, %s230, 3
        %p234 = scmp.lt.s32.totalorder %s231, 7
        %s235 = scalar_select %p234, %s231, 7
        %s236 = smul.addr %s233, 8
        %s237 = sadd.s32 %s235, %s236
        %s238 = smul.addr %s237, 8
        %s239 = scalar_lea.vmem %s3, %s238
        %s240 = sld [smem:[#allocation5 + %s29]]
        %p241 = scmp.eq.s32.totalorder %s240, %s29
        %s242 = scalar_select %p241, %s30, 1
        %s243 = sld [smem:[#allocation4 + %s29]]
        %s244 = smul.u32 4, %s242
      $region24: #{tpu_custom_call.1} parent=15 // pred_fallthru
        _
      // Predicated region
      $region25: #{tpu_custom_call.1} parent=15 // pred_check
        %p245 = pneg %p128
      $region26: #{tpu_custom_call.1} parent=15 // pred_check_branch
        %247 = sbr.rel (%p245) target = $region28
      $region27: #{tpu_custom_call.1} parent=15 // pred_region
        %s248 = sld [smem:[#allocation5 + %s29]]
        %p249 = scmp.eq.s32.totalorder %s248, %s29
        %s250 = scalar_select %p249, %s30, 1
        %s251 = sld [smem:[#allocation4 + %s29]]
        %s252 = smul.u32 4, %s250
        %p253 = scmp.lt.s32.totalorder %s251, 3
        %s254 = scalar_select %p253, %s251, 3
        %p255 = scmp.lt.s32.totalorder %s252, 7
        %s256 = scalar_select %p255, %s252, 7
        %s257 = smul.addr %s254, 8
        %s258 = sadd.s32 %s256, %s257
        %s259 = smul.addr %s258, 8
        %s260 = scalar_lea.vmem %s4, %s259
        %s261 = sld [smem:[#allocation5 + %s29]]
        %p262 = scmp.eq.s32.totalorder %s261, %s29
        %s263 = scalar_select %p262, %s30, 1
        %s264 = sld [smem:[#allocation4 + %s29]]
        %s265 = smul.u32 4, %s263
      $region28: #{tpu_custom_call.1} parent=15 // pred_fallthru
        _
      // Predicated region
      $region29: #{tpu_custom_call.1} parent=15 // pred_check
        %p266 = pneg %p164
      $region30: #{tpu_custom_call.1} parent=15 // pred_check_branch
        %268 = sbr.rel (%p266) target = $region32
      $region31: #{tpu_custom_call.1} parent=15 // pred_region
        %s269 = sld [smem:[#allocation5 + %s29]]
        %p270 = scmp.eq.s32.totalorder %s269, %s29
        %s271 = scalar_select %p270, %s30, 1
        %s272 = sld [smem:[#allocation4 + %s29]]
        %s273 = smul.u32 4, %s271
        %p274 = scmp.lt.s32.totalorder %s272, 3
        %s275 = scalar_select %p274, %s272, 3
        %p276 = scmp.lt.s32.totalorder %s273, 7
        %s277 = scalar_select %p276, %s273, 7
        %s278 = smul.addr %s275, 8
        %s279 = sadd.s32 %s277, %s278
        %s280 = smul.addr %s279, 8
        %s281 = scalar_lea.vmem %s5, %s280
        %s282 = sld [smem:[#allocation5 + %s29]]
        %p283 = scmp.eq.s32.totalorder %s282, %s29
        %s284 = scalar_select %p283, %s30, 1
        %s285 = sld [smem:[#allocation4 + %s29]]
        %s286 = smul.u32 4, %s284
      $region32: #{tpu_custom_call.1} parent=15 // pred_fallthru
        _
    $region16: #{tpu_custom_call.1} parent=5 // pred_fallthru
      _
    %p287 = scmp.le.s32.totalorder 1, %s22
    %p288 = scmp.lt.s32.totalorder %s22, 13
    %p289 = pnand %p287, %p288
    %p290 = pneg %p289
    // Predicated region
    $region33: #{tpu_custom_call.1} parent=5 // pred_check
      _
    $region34: #{tpu_custom_call.1} parent=5 // pred_check_branch
      %292 = sbr.rel (%p289) target = $region36
    $region35: #{tpu_custom_call.1} parent=5 // pred_region
      %s293 = ssub.s32 %s22, 1
      %s294 = sld [smem:[#allocation5 + %s31]]
      %p295 = scmp.lt.s32.totalorder %s294, 5
      %s296 = scalar_select %p295, %s294, 5
      %s297 = smul.addr %s296, 8
      %s298 = scalar_lea.vmem %s2, %s297
      %p299 = pneg %p62
      %p300 = pneg %p59
      %s301 = sld [smem:[#allocation5 + %s31]]
      %p302 = scmp.eq.s32.totalorder %s301, %s31
      %s303 = scalar_select %p302, %s32, 1
      %s304 = sld [smem:[#allocation4 + %s31]]
      %s305 = smul.u32 4, %s303
      %p306 = scmp.lt.s32.totalorder %s304, 3
      %s307 = scalar_select %p306, %s304, 3
      %p308 = scmp.lt.s32.totalorder %s305, 7
      %s309 = scalar_select %p308, %s305, 7
      %s310 = smul.addr %s307, 8
      %s311 = sadd.s32 %s309, %s310
      %s312 = smul.addr %s311, 8
      %s313 = scalar_lea.vmem %s3, %s312
      %p314 = pneg %p98
      %p315 = pneg %p95
      %s316 = sld [smem:[#allocation5 + %s31]]
      %p317 = scmp.eq.s32.totalorder %s316, %s31
      %s318 = scalar_select %p317, %s32, 1
      %s319 = sld [smem:[#allocation4 + %s31]]
      %s320 = smul.u32 4, %s318
      %p321 = scmp.lt.s32.totalorder %s319, 3
      %s322 = scalar_select %p321, %s319, 3
      %p323 = scmp.lt.s32.totalorder %s320, 7
      %s324 = scalar_select %p323, %s320, 7
      %s325 = smul.addr %s322, 8
      %s326 = sadd.s32 %s324, %s325
      %s327 = smul.addr %s326, 8
      %s328 = scalar_lea.vmem %s4, %s327
      %p329 = pneg %p134
      %p330 = pneg %p131
      %s331 = sld [smem:[#allocation5 + %s31]]
      %p332 = scmp.eq.s32.totalorder %s331, %s31
      %s333 = scalar_select %p332, %s32, 1
      %s334 = sld [smem:[#allocation4 + %s31]]
      %s335 = smul.u32 4, %s333
      %p336 = scmp.lt.s32.totalorder %s334, 3
      %s337 = scalar_select %p336, %s334, 3
      %p338 = scmp.lt.s32.totalorder %s335, 7
      %s339 = scalar_select %p338, %s335, 7
      %s340 = smul.addr %s337, 8
      %s341 = sadd.s32 %s339, %s340
      %s342 = smul.addr %s341, 8
      %s343 = scalar_lea.vmem %s5, %s342
      %p344 = pneg %p170
      %p345 = pneg %p167
      %p346 = pneg %p196
      %p347 = pneg %p193
      %p348 = scmp.lt.s32.totalorder %s31, 5
      %s349 = scalar_select %p348, %s31, 5
      %s350 = smul.addr %s349, 8
      %s351 = scalar_lea.vmem %s6, %s350
      %s352 = sld [smem:[#allocation5 + %s31]]
      %p353 = scmp.lt.s32.totalorder %s352, 5
      %s354 = scalar_select %p353, %s352, 5
      %s355 = smul.addr %s354, 8
      %s356 = scalar_lea.vmem %s2, %s355
      %s357 = sld [smem:[#allocation5 + %s31]]
      %s358 = sld [smem:[#allocation5 + %s31]]
      %p359 = scmp.eq.s32.totalorder %s358, %s31
      %s360 = scalar_select %p359, %s32, 1
      %s361 = sld [smem:[#allocation4 + %s31]]
      %s362 = smul.u32 4, %s360
      %p363 = scmp.lt.s32.totalorder %s361, 3
      %s364 = scalar_select %p363, %s361, 3
      %p365 = scmp.lt.s32.totalorder %s362, 7
      %s366 = scalar_select %p365, %s362, 7
      %s367 = smul.addr %s364, 8
      %s368 = sadd.s32 %s366, %s367
      %s369 = smul.addr %s368, 8
      %s370 = scalar_lea.vmem %s3, %s369
      %s371 = sld [smem:[#allocation5 + %s31]]
      %p372 = scmp.eq.s32.totalorder %s371, %s31
      %s373 = scalar_select %p372, %s32, 1
      %s374 = sld [smem:[#allocation4 + %s31]]
      %s375 = smul.u32 4, %s373
      %s376 = sld [smem:[#allocation5 + %s31]]
      %p377 = scmp.eq.s32.totalorder %s376, %s31
      %s378 = scalar_select %p377, %s32, 1
      %s379 = sld [smem:[#allocation4 + %s31]]
      %s380 = smul.u32 4, %s378
      %p381 = scmp.lt.s32.totalorder %s379, 3
      %s382 = scalar_select %p381, %s379, 3
      %p383 = scmp.lt.s32.totalorder %s380, 7
      %s384 = scalar_select %p383, %s380, 7
      %s385 = smul.addr %s382, 8
      %s386 = sadd.s32 %s384, %s385
      %s387 = smul.addr %s386, 8
      %s388 = scalar_lea.vmem %s4, %s387
      %s389 = sld [smem:[#allocation5 + %s31]]
      %p390 = scmp.eq.s32.totalorder %s389, %s31
      %s391 = scalar_select %p390, %s32, 1
      %s392 = sld [smem:[#allocation4 + %s31]]
      %s393 = smul.u32 4, %s391
      %s394 = sld [smem:[#allocation5 + %s31]]
      %p395 = scmp.eq.s32.totalorder %s394, %s31
      %s396 = scalar_select %p395, %s32, 1
      %s397 = sld [smem:[#allocation4 + %s31]]
      %s398 = smul.u32 4, %s396
      %p399 = scmp.lt.s32.totalorder %s397, 3
      %s400 = scalar_select %p399, %s397, 3
      %p401 = scmp.lt.s32.totalorder %s398, 7
      %s402 = scalar_select %p401, %s398, 7
      %s403 = smul.addr %s400, 8
      %s404 = sadd.s32 %s402, %s403
      %s405 = smul.addr %s404, 8
      %s406 = scalar_lea.vmem %s5, %s405
      %s407 = sld [smem:[#allocation5 + %s31]]
      %p408 = scmp.eq.s32.totalorder %s407, %s31
      %s409 = scalar_select %p408, %s32, 1
      %s410 = sld [smem:[#allocation4 + %s31]]
      %s411 = smul.u32 4, %s409
      %p412 = scmp.lt.s32.totalorder %s31, 5
      %s413 = scalar_select %p412, %s31, 5
      %s414 = smul.addr %s413, 8
      %s415 = scalar_lea.vmem %s6, %s414
      %s416 = sld [smem:[#allocation5 + %s31]]
      %p417 = scmp.eq.s32.totalorder %s416, %s31
      %p418 = scmp.eq.s32.totalorder %s32, 0
      %p419 = pnand %p417, %p418
      %p420 = pneg %p419
      // Predicated region
      $region37: #{tpu_custom_call.1} parent=35 // pred_check
        _
      $region38: #{tpu_custom_call.1} parent=35 // pred_check_branch
        %422 = sbr.rel (%p419) target = $region40
      $region39: #{tpu_custom_call.1} parent=35 // pred_region
        %vm423 = vcmask 261120
        %424 = vst.msk [vmem:[#allocation2] sm:$0xff] %vm423, 0.0
      $region40: #{tpu_custom_call.1} parent=35 // pred_fallthru
        _
      // Predicated region
      $region41: #{tpu_custom_call.1} parent=35 // pred_check
        %p425 = pneg %p417
      $region42: #{tpu_custom_call.1} parent=35 // pred_check_branch
        %427 = sbr.rel (%p425) target = $region44
      $region43: #{tpu_custom_call.1} parent=35 // pred_region
        %v428 = vld [vmem:[%s356] sm:$0xff]
        %v429 = vld [vmem:[%s370] sm:$0xff]
        %v430 = vld [vmem:[%s370 + $0x8] sm:$0xff]
        %v431 = vld [vmem:[%s370 + $0x10] sm:$0xff]
        %v432 = vld [vmem:[%s370 + $0x18] sm:$0xff]
        %vm433 = vcmask 261120
        %v435 = vsel %vm433, %v428, 0
        %v438 = vsel %vm433, %v429, 0
        %v441 = vsel %vm433, %v430, 0
        %v444 = vsel %vm433, %v431, 0
        %v447 = vsel %vm433, %v432, 0
        %449 = vmatprep.subr.mxu0 0.0
        %450 = vmatpush1.xpose.msra.mxu0 0.0
        %451 = vmatprep.subr.mxu0 0.0
        %452 = vmatpush1.xpose.msra.mxu0 0.0
        %453 = vmatprep.subr.mxu0 0.0
        %454 = vmatpush1.xpose.msra.mxu0 0.0
        %455 = vmatprep.subr.mxu0 0.0
        %456 = vmatpush1.xpose.msra.mxu0 0.0
        %457 = vmatprep.subr.mxu0 0.0
        %458 = vmatpush1.xpose.msra.mxu0 0.0
        %459 = vmatprep.subr.mxu0 0.0
        %460 = vmatpush1.xpose.msra.mxu0 0.0
        %461 = vmatprep.subr.mxu0 0.0
        %462 = vmatpush1.xpose.msra.mxu0 0.0
        %463 = vmatprep.subr.mxu0 0.0
        %464 = vmatpush1.xpose.msra.mxu0 0.0
        %465 = vmatprep.subr.mxu0 0.0
        %466 = vmatpush1.xpose.msra.mxu0 0.0
        %467 = vmatprep.subr.mxu0 0.0
        %468 = vmatpush1.xpose.msra.mxu0 0.0
        %469 = vmatprep.subr.mxu0 0.0
        %470 = vmatpush1.xpose.msra.mxu0 0.0
        %471 = vmatprep.subr.mxu0 0.0
        %472 = vmatpush1.xpose.msra.mxu0 0.0
        %473 = vmatprep.subr.mxu0 0.0
        %474 = vmatpush1.xpose.msra.mxu0 %v447
        %475 = vmatprep.subr.mxu0 0.0
        %476 = vmatpush1.xpose.msra.mxu0 %v444
        %477 = vmatprep.subr.mxu0 0.0
        %478 = vmatpush1.xpose.msra.mxu0 %v441
        %479 = vmatprep.subr.mxu0 0.0
        %480 = vmatpush1.xpose.msra.mxu0 %v438
        %481 = vmatprep.subr.mxu0 0.0
        %482 = vmatpush2.xpose.msra.mxu0 0.0
        %483 = vmatprep.subr.mxu0 0.0
        %484 = vmatpush2.xpose.msra.mxu0 0.0
        %485 = vmatprep.subr.mxu0 0.0
        %486 = vmatpush2.xpose.msra.mxu0 0.0
        %487 = vmatprep.subr.mxu0 0.0
        %488 = vmatpush2.xpose.msra.mxu0 0.0
        %489 = vmatprep.subr.mxu0 0.0
        %490 = vmatpush2.xpose.msra.mxu0 0.0
        %491 = vmatprep.subr.mxu0 0.0
        %492 = vmatpush2.xpose.msra.mxu0 0.0
        %493 = vmatprep.subr.mxu0 0.0
        %494 = vmatpush2.xpose.msra.mxu0 0.0
        %495 = vmatprep.subr.mxu0 0.0
        %496 = vmatpush2.xpose.msra.mxu0 0.0
        %497 = vmatprep.subr.mxu0 0.0
        %498 = vmatpush2.xpose.msra.mxu0 0.0
        %499 = vmatprep.subr.mxu0 0.0
        %500 = vmatpush2.xpose.msra.mxu0 0.0
        %501 = vmatprep.subr.mxu0 0.0
        %502 = vmatpush2.xpose.msra.mxu0 0.0
        %503 = vmatprep.subr.mxu0 0.0
        %504 = vmatpush2.xpose.msra.mxu0 0.0
        %505 = vmatprep.subr.mxu0 0.0
        %506 = vmatpush2.xpose.msra.mxu0 0.0
        %507 = vmatprep.subr.mxu0 0.0
        %508 = vmatpush2.xpose.msra.mxu0 0.0
        %509 = vmatprep.subr.mxu0 0.0
        %510 = vmatpush2.xpose.msra.mxu0 0.0
        %511 = vmatprep.subr.mxu0 0.0
        %512 = vmatpush2.xpose.msra.mxu0 0.0
        %513 = vmatprep.mubr.f32.mxu0 0.0
        %514 = vmatmul.mubr.f32.gmra.mxu0 %v435
        %v515 = vpop.f32.mrf.mxu0
        %v516 = vadd.f32 0.0, %v515
        %v517 = vpop.f32.mrf.mxu0
        %518 = vdwg.mxu0
        %v519 = vld [vmem:[%s388] sm:$0xff]
        %v520 = vld [vmem:[%s388 + $0x8] sm:$0xff]
        %v521 = vld [vmem:[%s388 + $0x10] sm:$0xff]
        %v522 = vld [vmem:[%s388 + $0x18] sm:$0xff]
        %v524 = vsel %vm433, %v519, 0
        %v527 = vsel %vm433, %v520, 0
        %v530 = vsel %vm433, %v521, 0
        %v533 = vsel %vm433, %v522, 0
        %535 = vmatprep.subr.mxu0 0.0
        %536 = vmatpush1.xpose.msra.mxu0 0.0
        %537 = vmatprep.subr.mxu0 0.0
        %538 = vmatpush1.xpose.msra.mxu0 0.0
        %539 = vmatprep.subr.mxu0 0.0
        %540 = vmatpush1.xpose.msra.mxu0 0.0
        %541 = vmatprep.subr.mxu0 0.0
        %542 = vmatpush1.xpose.msra.mxu0 0.0
        %543 = vmatprep.subr.mxu0 0.0
        %544 = vmatpush1.xpose.msra.mxu0 0.0
        %545 = vmatprep.subr.mxu0 0.0
        %546 = vmatpush1.xpose.msra.mxu0 0.0
        %547 = vmatprep.subr.mxu0 0.0
        %548 = vmatpush1.xpose.msra.mxu0 0.0
        %549 = vmatprep.subr.mxu0 0.0
        %550 = vmatpush1.xpose.msra.mxu0 0.0
        %551 = vmatprep.subr.mxu0 0.0
        %552 = vmatpush1.xpose.msra.mxu0 0.0
        %553 = vmatprep.subr.mxu0 0.0
        %554 = vmatpush1.xpose.msra.mxu0 0.0
        %555 = vmatprep.subr.mxu0 0.0
        %556 = vmatpush1.xpose.msra.mxu0 0.0
        %557 = vmatprep.subr.mxu0 0.0
        %558 = vmatpush1.xpose.msra.mxu0 0.0
        %559 = vmatprep.subr.mxu0 0.0
        %560 = vmatpush1.xpose.msra.mxu0 %v533
        %561 = vmatprep.subr.mxu0 0.0
        %562 = vmatpush1.xpose.msra.mxu0 %v530
        %563 = vmatprep.subr.mxu0 0.0
        %564 = vmatpush1.xpose.msra.mxu0 %v527
        %565 = vmatprep.subr.mxu0 0.0
        %566 = vmatpush1.xpose.msra.mxu0 %v524
        %567 = vmatprep.subr.mxu0 0.0
        %568 = vmatpush2.xpose.msra.mxu0 0.0
        %569 = vmatprep.subr.mxu0 0.0
        %570 = vmatpush2.xpose.msra.mxu0 0.0
        %571 = vmatprep.subr.mxu0 0.0
        %572 = vmatpush2.xpose.msra.mxu0 0.0
        %573 = vmatprep.subr.mxu0 0.0
        %574 = vmatpush2.xpose.msra.mxu0 0.0
        %575 = vmatprep.subr.mxu0 0.0
        %576 = vmatpush2.xpose.msra.mxu0 0.0
        %577 = vmatprep.subr.mxu0 0.0
        %578 = vmatpush2.xpose.msra.mxu0 0.0
        %579 = vmatprep.subr.mxu0 0.0
        %580 = vmatpush2.xpose.msra.mxu0 0.0
        %581 = vmatprep.subr.mxu0 0.0
        %582 = vmatpush2.xpose.msra.mxu0 0.0
        %583 = vmatprep.subr.mxu0 0.0
        %584 = vmatpush2.xpose.msra.mxu0 0.0
        %585 = vmatprep.subr.mxu0 0.0
        %586 = vmatpush2.xpose.msra.mxu0 0.0
        %587 = vmatprep.subr.mxu0 0.0
        %588 = vmatpush2.xpose.msra.mxu0 0.0
        %589 = vmatprep.subr.mxu0 0.0
        %590 = vmatpush2.xpose.msra.mxu0 0.0
        %591 = vmatprep.subr.mxu0 0.0
        %592 = vmatpush2.xpose.msra.mxu0 0.0
        %593 = vmatprep.subr.mxu0 0.0
        %594 = vmatpush2.xpose.msra.mxu0 0.0
        %595 = vmatprep.subr.mxu0 0.0
        %596 = vmatpush2.xpose.msra.mxu0 0.0
        %597 = vmatprep.subr.mxu0 0.0
        %598 = vmatpush2.xpose.msra.mxu0 0.0
        %599 = vmatprep.mubr.f32.mxu0 0.0
        %600 = vmatmul.mubr.f32.gmra.mxu0 %v435
        %v601 = vpop.f32.mrf.mxu0
        %v602 = vadd.f32 0.0, %v601
        %v603 = vpop.f32.mrf.mxu0
        %604 = vdwg.mxu0
        %v605 = vxor.u32 %v516, 2147483648
        %v606 = vmul.f32 %v605, 1.442695
        %v607 = vpow.pop %v606
        %v608 = vadd.f32 %v607, 1.0
        %v609 = vrcp.pop %v608
        %v610 = vmul.f32 1.0, %v609
        %v611 = vmul.f32 %v516, %v610
        %v612 = vmul.f32 %v611, %v602
        %v613 = vld [vmem:[#allocation2] sm:$0xff]
        %v614 = vld [vmem:[%s406] sm:$0xff]
        %v615 = vld [vmem:[%s406 + $0x8] sm:$0xff]
        %v616 = vld [vmem:[%s406 + $0x10] sm:$0xff]
        %v617 = vld [vmem:[%s406 + $0x18] sm:$0xff]
        %v619 = vsel %vm433, %v612, 0
        %621 = vmatprep.subr.mxu0 0.0
        %622 = vmatpush1.msra.mxu0 0.0
        %623 = vmatprep.subr.mxu0 0.0
        %624 = vmatpush1.msra.mxu0 0.0
        %625 = vmatprep.subr.mxu0 0.0
        %626 = vmatpush1.msra.mxu0 0.0
        %627 = vmatprep.subr.mxu0 0.0
        %628 = vmatpush1.msra.mxu0 0.0
        %629 = vmatprep.subr.mxu0 0.0
        %630 = vmatpush1.msra.mxu0 0.0
        %631 = vmatprep.subr.mxu0 0.0
        %632 = vmatpush1.msra.mxu0 0.0
        %633 = vmatprep.subr.mxu0 0.0
        %634 = vmatpush1.msra.mxu0 0.0
        %635 = vmatprep.subr.mxu0 0.0
        %636 = vmatpush1.msra.mxu0 0.0
        %637 = vmatprep.subr.mxu0 0.0
        %638 = vmatpush1.msra.mxu0 0.0
        %639 = vmatprep.subr.mxu0 0.0
        %640 = vmatpush1.msra.mxu0 0.0
        %641 = vmatprep.subr.mxu0 0.0
        %642 = vmatpush1.msra.mxu0 0.0
        %643 = vmatprep.subr.mxu0 0.0
        %644 = vmatpush1.msra.mxu0 0.0
        %645 = vmatprep.subr.mxu0 0.0
        %646 = vmatpush1.msra.mxu0 %v617
        %647 = vmatprep.subr.mxu0 0.0
        %648 = vmatpush1.msra.mxu0 %v616
        %649 = vmatprep.subr.mxu0 0.0
        %650 = vmatpush1.msra.mxu0 %v615
        %651 = vmatprep.subr.mxu0 0.0
        %652 = vmatpush1.msra.mxu0 %v614
        %653 = vmatprep.subr.mxu0 0.0
        %654 = vmatpush2.msra.mxu0 0.0
        %655 = vmatprep.subr.mxu0 0.0
        %656 = vmatpush2.msra.mxu0 0.0
        %657 = vmatprep.subr.mxu0 0.0
        %658 = vmatpush2.msra.mxu0 0.0
        %659 = vmatprep.subr.mxu0 0.0
        %660 = vmatpush2.msra.mxu0 0.0
        %661 = vmatprep.subr.mxu0 0.0
        %662 = vmatpush2.msra.mxu0 0.0
        %663 = vmatprep.subr.mxu0 0.0
        %664 = vmatpush2.msra.mxu0 0.0
        %665 = vmatprep.subr.mxu0 0.0
        %666 = vmatpush2.msra.mxu0 0.0
        %667 = vmatprep.subr.mxu0 0.0
        %668 = vmatpush2.msra.mxu0 0.0
        %669 = vmatprep.subr.mxu0 0.0
        %670 = vmatpush2.msra.mxu0 0.0
        %671 = vmatprep.subr.mxu0 0.0
        %672 = vmatpush2.msra.mxu0 0.0
        %673 = vmatprep.subr.mxu0 0.0
        %674 = vmatpush2.msra.mxu0 0.0
        %675 = vmatprep.subr.mxu0 0.0
        %676 = vmatpush2.msra.mxu0 0.0
        %677 = vmatprep.subr.mxu0 0.0
        %678 = vmatpush2.msra.mxu0 0.0
        %679 = vmatprep.subr.mxu0 0.0
        %680 = vmatpush2.msra.mxu0 0.0
        %681 = vmatprep.subr.mxu0 0.0
        %682 = vmatpush2.msra.mxu0 0.0
        %683 = vmatprep.subr.mxu0 0.0
        %684 = vmatpush2.msra.mxu0 0.0
        %685 = vmatprep.mubr.f32.mxu0 0.0
        %686 = vmatmul.mubr.f32.gmra.mxu0 %v619
        %v687 = vpop.f32.mrf.mxu0
        %v688 = vadd.f32 0.0, %v687
        %v689 = vpop.f32.mrf.mxu0
        %690 = vdwg.mxu0
        %v691 = vadd.f32 %v613, %v688
        %692 = vst.msk [vmem:[#allocation2] sm:$0xff] %vm433, %v691
      $region44: #{tpu_custom_call.1} parent=35 // pred_fallthru
        _
      %p693 = scmp.eq.s32.totalorder %s32, 1
      %p694 = pnand %p417, %p693
      %p695 = pneg %p694
      // Predicated region
      $region45: #{tpu_custom_call.1} parent=35 // pred_check
        _
      $region46: #{tpu_custom_call.1} parent=35 // pred_check_branch
        %697 = sbr.rel (%p694) target = $region48
      $region47: #{tpu_custom_call.1} parent=35 // pred_region
        %v698 = vld [vmem:[#allocation2] sm:$0xff]
        %vm699 = vcmask 261120
        %700 = vst.msk [vmem:[%s415] sm:$0xff] %vm699, %v698
      $region48: #{tpu_custom_call.1} parent=35 // pred_fallthru
        _
      %p701 = scmp.lt.s32.totalorder %s31, 5
      %s702 = scalar_select %p701, %s31, 5
      %s703 = smul.addr %s702, 8
      %s704 = scalar_lea.vmem %s6, %s703
      // Predicated region
      $region49: #{tpu_custom_call.1} parent=35 // pred_check
        %p705 = pneg %p193
      $region50: #{tpu_custom_call.1} parent=35 // pred_check_branch
        %707 = sbr.rel (%p705) target = $region52
      $region51: #{tpu_custom_call.1} parent=35 // pred_region
        _
      $region52: #{tpu_custom_call.1} parent=35 // pred_fallthru
        _
    $region36: #{tpu_custom_call.1} parent=5 // pred_fallthru
      _
    %p708 = scmp.le.s32.totalorder 2, %s22
    // Predicated region
    $region53: #{tpu_custom_call.1} parent=5 // pred_check
      %p709 = pneg %p708
    $region54: #{tpu_custom_call.1} parent=5 // pred_check_branch
      %711 = sbr.rel (%p709) target = $region56
    $region55: #{tpu_custom_call.1} parent=5 // pred_region
      %s712 = ssub.s32 %s22, 2
      // Predicated region
      $region57: #{tpu_custom_call.1} parent=55 // pred_check
        %p713 = pneg %p199
      $region58: #{tpu_custom_call.1} parent=55 // pred_check_branch
        %715 = sbr.rel (%p713) target = $region60
      $region59: #{tpu_custom_call.1} parent=55 // pred_region
        %p716 = scmp.lt.s32.totalorder %s33, 5
        %s717 = scalar_select %p716, %s33, 5
        %s718 = smul.addr %s717, 8
        %s719 = scalar_lea.vmem %s6, %s718
      $region60: #{tpu_custom_call.1} parent=55 // pred_fallthru
        _
    $region56: #{tpu_custom_call.1} parent=5 // pred_fallthru
      _
  $region6: #{tpu_custom_call.1} parent=0 // loop_footer
    %s26 = sadd.s32 1, %s22
  $region7: #{tpu_custom_call.1} parent=0 // loop_footer_branch
    %21 = sbr.rel target = $region3
  $region8: #{tpu_custom_call.1} parent=0 // loop_exit
    _

</llo_original>
